<compile_context>
chip_gen: v6e
topology: v6e:2x2x1
jax: 0.10.0
libtpu: 0.0.40
codegen_flags: <defaults>
</compile_context>

<pallas_src>
import functools

import jax
import jax.numpy as jnp
import numpy as np
from jax.experimental import pallas as pl
from jax.experimental.pallas import tpu as pltpu


def _round_up(x, m):
    return (x + m - 1) // m * m


# ---------------------------------------------------------------------------
# Kernel
# ---------------------------------------------------------------------------
def _actor_kernel(x_ref, w1_ref, b1_ref, w2_ref, b2_ref, w3_ref, b3_ref,
                  out_ref, *, max_action):
    # x / weights are bf16; matmuls accumulate in f32 on the MXU.
    # Bias tiles are (8, N) replicated rows (sublane-aligned); row 0 is used.
    x = x_ref[...]

    h1 = jnp.dot(x, w1_ref[...], preferred_element_type=jnp.float32)
    h1 = jnp.maximum(h1 + b1_ref[0:1, :], 0.0)               # f32 VPU

    h2 = jnp.dot(h1.astype(jnp.bfloat16), w2_ref[...],
                 preferred_element_type=jnp.float32)
    h2 = jnp.maximum(h2 + b2_ref[0:1, :], 0.0)

    h3 = jnp.dot(h2.astype(jnp.bfloat16), w3_ref[...],
                 preferred_element_type=jnp.float32)
    out = max_action * jnp.tanh(h3 + b3_ref[0:1, :])          # f32 tanh (EUP)

    out_ref[...] = out.astype(out_ref.dtype)                  # bf16 store


# ---------------------------------------------------------------------------
# Parameter preparation (pad + cast once, reuse across calls)
# ---------------------------------------------------------------------------
def prepare_actor_params(params):
    """Zero-pad params to 128-multiples; weights -> bf16, biases -> (8, N) f32."""
    S, H = params["W1"].shape
    _, A = params["W3"].shape
    Sp, Hp, Ap = _round_up(S, 128), _round_up(H, 128), _round_up(A, 128)

    def pad_w(w, rows, cols):
        return jnp.pad(w, ((0, rows - w.shape[0]),
                           (0, cols - w.shape[1]))).astype(jnp.bfloat16)

    def pad_b(b, cols):
        b = jnp.asarray(b, jnp.float32).reshape(1, -1)
        b = jnp.pad(b, ((0, 0), (0, cols - b.shape[1])))
        # Replicate to 8 sublanes so the VMEM tile is vreg-aligned.
        return jnp.tile(b, (8, 1))

    padded = {
        "W1": pad_w(params["W1"], Sp, Hp), "b1": pad_b(params["b1"], Hp),
        "W2": pad_w(params["W2"], Hp, Hp), "b2": pad_b(params["b2"], Hp),
        "W3": pad_w(params["W3"], Hp, Ap), "b3": pad_b(params["b3"], Ap),
    }
    dims = (S, A, Sp, Hp, Ap)
    return padded, dims


# ---------------------------------------------------------------------------
# Tiling helpers
# ---------------------------------------------------------------------------
def select_batch_tile(batch, max_batch_tile=512):
    """Pick (TB, Bp): TB multiple of 8 (<= max_batch_tile), Bp multiple of TB.
    Forces >= 2 grid steps when batch > 8 so v7x's two TensorCores both work."""
    b8 = _round_up(batch, 8)
    tb = min(_round_up(max_batch_tile, 8), b8)
    if batch > 8:
        tb = min(tb, _round_up((b8 + 1) // 2, 8))
    bp = _round_up(b8, tb)
    return tb, bp


def pad_state(state, dims, batch_padded):
    """(B, S) f32 -> (Bp, Sp) bf16 with exact zero padding."""
    S, A, Sp, Hp, Ap = dims
    B = state.shape[0]
    return jnp.pad(state.astype(jnp.bfloat16),
                   ((0, batch_padded - B), (0, Sp - S)))


# ---------------------------------------------------------------------------
# pallas_call construction
# ---------------------------------------------------------------------------
def _build_call(dims, TB, Bp, max_action, out_dtype, single_buffer_weights):
    S, A, Sp, Hp, Ap = dims
    row = lambda i: (i, 0)        # batch-tiled operands
    fixed = lambda i: (0, 0)      # grid-invariant (resident) operands

    if single_buffer_weights:
        # Constant-index inputs don't need double buffering; halves resident
        # weight VMEM (matters on v7x's 64 MiB when hidden_dim is large).
        wspec = lambda shape: pl.BlockSpec(shape, fixed,
                                           pipeline_mode=pl.Buffered(1))
    else:
        wspec = lambda shape: pl.BlockSpec(shape, fixed)

    # Advisory cost so XLA can overlap surrounding ops with the kernel.
    flops = 2 * Bp * (Sp * Hp + Hp * Hp + Hp * Ap)
    bytes_accessed = (Bp * Sp * 2 + Bp * Ap * 2                      # x, out (bf16)
                      + (Sp * Hp + Hp * Hp + Hp * Ap) * 2            # weights (bf16)
                      + (2 * 8 * Hp + 8 * Ap) * 4)                   # biases (f32)
    cost = pl.CostEstimate(flops=flops, transcendentals=Bp * Ap,
                           bytes_accessed=bytes_accessed)

    return pl.pallas_call(
        functools.partial(_actor_kernel, max_action=float(max_action)),
        out_shape=jax.ShapeDtypeStruct((Bp, Ap), out_dtype),
        grid=(Bp // TB,),
        in_specs=[
            pl.BlockSpec((TB, Sp), row),
            wspec((Sp, Hp)), wspec((8, Hp)),
            wspec((Hp, Hp)), wspec((8, Hp)),
            wspec((Hp, Ap)), wspec((8, Ap)),
        ],
        out_specs=pl.BlockSpec((TB, Ap), row),
        compiler_params=pltpu.CompilerParams(
            dimension_semantics=("parallel",)),
        cost_estimate=cost,
    )


_WEIGHT_SINGLE_BUFFER = None   # resolved lazily on first call (True/False)


def actor_forward_padded(state_padded, padded_params, dims, max_action,
                         batch_tile, out_dtype=jnp.bfloat16):
    """Hot path: state_padded is (Bp, Sp) bf16 with Bp % batch_tile == 0.
    Returns the raw (Bp, Ap) out_dtype buffer (caller slices lazily)."""
    global _WEIGHT_SINGLE_BUFFER
    Bp = state_padded.shape[0]
    args = (state_padded,
            padded_params["W1"], padded_params["b1"],
            padded_params["W2"], padded_params["b2"],
            padded_params["W3"], padded_params["b3"])

    modes = ((True, False) if _WEIGHT_SINGLE_BUFFER is None
             else (_WEIGHT_SINGLE_BUFFER,))
    last_err = None
    for single in modes:
        try:
            call = _build_call(dims, batch_tile, Bp, max_action, out_dtype,
                               single_buffer_weights=single)
            out = call(*args)
            if _WEIGHT_SINGLE_BUFFER is None:
                out = jax.block_until_ready(out)   # surface compile errors here
                _WEIGHT_SINGLE_BUFFER = single
            return out
        except Exception as err:   # pl.Buffered(1) unsupported -> default bufs
            last_err = err
    raise last_err


def actor_forward(state, padded_params, dims, max_action, max_batch_tile=512):
    """Convenience wrapper: pads/casts state, runs the kernel, slices output.
    Latency-critical callers should keep state pre-padded (pad_state) and
    consume the padded bf16 output of actor_forward_padded directly."""
    S, A, Sp, Hp, Ap = dims
    B = state.shape[0]
    TB, Bp = select_batch_tile(B, max_batch_tile)
    xp = pad_state(state, dims, Bp)
    out = actor_forward_padded(xp, padded_params, dims, max_action, TB)
    return out[:B, :A]


# ---------------------------------------------------------------------------
# Init + reference (f32)
# ---------------------------------------------------------------------------
def _xavier_uniform(key, fan_in, fan_out):
    # Matches nn.init.xavier_uniform_ (gain=1).
    limit = float(np.sqrt(6.0 / (fan_in + fan_out)))
    return jax.random.uniform(key, (fan_in, fan_out), jnp.float32,
                              minval=-limit, maxval=limit)


def init_actor_params(key, state_dim, action_dim, hidden_dim):
    k1, k2, k3 = jax.random.split(key, 3)
    return {
        "W1": _xavier_uniform(k1, state_dim, hidden_dim),
        "b1": jnp.zeros((1, hidden_dim), jnp.float32),
        "W2": _xavier_uniform(k2, hidden_dim, hidden_dim),
        "b2": jnp.zeros((1, hidden_dim), jnp.float32),
        "W3": _xavier_uniform(k3, hidden_dim, action_dim),
        "b3": jnp.zeros((1, action_dim), jnp.float32),
    }


def actor_forward_ref(state, params, max_action):
    a = jnp.maximum(state @ params["W1"] + params["b1"], 0.0)
    a = jnp.maximum(a @ params["W2"] + params["b2"], 0.0)
    return max_action * jnp.tanh(a @ params["W3"] + params["b3"])


if __name__ == "__main__":
    key = jax.random.PRNGKey(0)
    k_params, k_state, k_state2 = jax.random.split(key, 3)

    state_dim, action_dim, hidden_dim = 8, 4, 32
    max_action = 2.0

    params = init_actor_params(k_params, state_dim, action_dim, hidden_dim)
    padded_params, dims = prepare_actor_params(params)

    # bf16 matmul inputs + bf16 output vs f32 reference -> loosened tolerance.
    RTOL, ATOL = 2e-2, 4e-2

    # Small batch (single grid step).
    batch = 2
    state = jax.random.normal(k_state, (batch, state_dim), jnp.float32)
    out = actor_forward(state, padded_params, dims, max_action)
    out = jax.block_until_ready(out)
    ref = actor_forward_ref(state, params, max_action)
    np.testing.assert_allclose(np.asarray(out.astype(jnp.float32)),
                               np.asarray(ref), rtol=RTOL, atol=ATOL)
    assert out.shape == (batch, action_dim)

    # Larger batch: exercises batch padding and the >=2-step parallel grid.
    batch2 = 300
    state2 = jax.random.normal(k_state2, (batch2, state_dim), jnp.float32)
    out2 = actor_forward(state2, padded_params, dims, max_action)
    out2 = jax.block_until_ready(out2)
    ref2 = actor_forward_ref(state2, params, max_action)
    np.testing.assert_allclose(np.asarray(out2.astype(jnp.float32)),
                               np.asarray(ref2), rtol=RTOL, atol=ATOL)
    assert out2.shape == (batch2, action_dim)

    print("KERNEL_OK")
</pallas_src>

<mosaic_0001>
module attributes {stable_mosaic.version = 11 : i64} {
  func.func @_actor_kernel(%arg0: i32, %arg1: memref<8x128xbf16, #tpu.memory_space<vmem>>, %arg2: memref<128x128xbf16, #tpu.memory_space<vmem>>, %arg3: memref<8x128xf32, #tpu.memory_space<vmem>>, %arg4: memref<128x128xbf16, #tpu.memory_space<vmem>>, %arg5: memref<8x128xf32, #tpu.memory_space<vmem>>, %arg6: memref<128x128xbf16, #tpu.memory_space<vmem>>, %arg7: memref<8x128xf32, #tpu.memory_space<vmem>>, %arg8: memref<8x128xbf16, #tpu.memory_space<vmem>>) attributes {dimension_semantics = [#tpu.dimension_semantics<parallel>], iteration_bounds = array<i64: 1>, scalar_prefetch = 0 : i64, scratch_operands = 0 : i64, tpu.core_type = #tpu.core_type<tc>, window_params = [{transform_indices = @transform_0, window_bounds = array<i64: 8, 128>}, {pipeline_mode = #tpu.pipeline_mode<synchronous>, transform_indices = @transform_1, window_bounds = array<i64: 128, 128>}, {pipeline_mode = #tpu.pipeline_mode<synchronous>, transform_indices = @transform_2, window_bounds = array<i64: 8, 128>}, {pipeline_mode = #tpu.pipeline_mode<synchronous>, transform_indices = @transform_3, window_bounds = array<i64: 128, 128>}, {pipeline_mode = #tpu.pipeline_mode<synchronous>, transform_indices = @transform_4, window_bounds = array<i64: 8, 128>}, {pipeline_mode = #tpu.pipeline_mode<synchronous>, transform_indices = @transform_5, window_bounds = array<i64: 128, 128>}, {pipeline_mode = #tpu.pipeline_mode<synchronous>, transform_indices = @transform_6, window_bounds = array<i64: 8, 128>}, {transform_indices = @transform_7, window_bounds = array<i64: 8, 128>}]} {
    %c0 = arith.constant 0 : index
    %c0_0 = arith.constant 0 : index
    %0 = vector.load %arg1[%c0, %c0_0] : memref<8x128xbf16, #tpu.memory_space<vmem>>, vector<8x128xbf16>
    %c0_1 = arith.constant 0 : index
    %c0_2 = arith.constant 0 : index
    %1 = vector.load %arg2[%c0_1, %c0_2] : memref<128x128xbf16, #tpu.memory_space<vmem>>, vector<128x128xbf16>
    %cst = arith.constant dense<0.000000e+00> : vector<8x128xf32>
    %2 = tpu.matmul %0, %1, %cst {dimension_numbers = #tpu.dot_dimension_numbers<[1], [0], [0], [1], [0, 0, 1, 1], [], []>} : vector<8x128xbf16>, vector<128x128xbf16>, vector<8x128xf32> -> vector<8x128xf32>
    %c0_3 = arith.constant 0 : index
    %c0_4 = arith.constant 0 : index
    %3 = vector.load %arg3[%c0_3, %c0_4] : memref<8x128xf32, #tpu.memory_space<vmem>>, vector<1x128xf32>
    %4 = vector.broadcast %3 : vector<1x128xf32> to vector<8x128xf32>
    %5 = arith.addf %2, %4 : vector<8x128xf32>
    %cst_5 = arith.constant 0.000000e+00 : f32
    %6 = vector.broadcast %cst_5 : f32 to vector<8x128xf32>
    %7 = arith.maximumf %5, %6 : vector<8x128xf32>
    %8 = arith.truncf %7 : vector<8x128xf32> to vector<8x128xbf16>
    %c0_6 = arith.constant 0 : index
    %c0_7 = arith.constant 0 : index
    %9 = vector.load %arg4[%c0_6, %c0_7] : memref<128x128xbf16, #tpu.memory_space<vmem>>, vector<128x128xbf16>
    %cst_8 = arith.constant dense<0.000000e+00> : vector<8x128xf32>
    %10 = tpu.matmul %8, %9, %cst_8 {dimension_numbers = #tpu.dot_dimension_numbers<[1], [0], [0], [1], [0, 0, 1, 1], [], []>} : vector<8x128xbf16>, vector<128x128xbf16>, vector<8x128xf32> -> vector<8x128xf32>
    %c0_9 = arith.constant 0 : index
    %c0_10 = arith.constant 0 : index
    %11 = vector.load %arg5[%c0_9, %c0_10] : memref<8x128xf32, #tpu.memory_space<vmem>>, vector<1x128xf32>
    %12 = vector.broadcast %11 : vector<1x128xf32> to vector<8x128xf32>
    %13 = arith.addf %10, %12 : vector<8x128xf32>
    %cst_11 = arith.constant 0.000000e+00 : f32
    %14 = vector.broadcast %cst_11 : f32 to vector<8x128xf32>
    %15 = arith.maximumf %13, %14 : vector<8x128xf32>
    %16 = arith.truncf %15 : vector<8x128xf32> to vector<8x128xbf16>
    %c0_12 = arith.constant 0 : index
    %c0_13 = arith.constant 0 : index
    %17 = vector.load %arg6[%c0_12, %c0_13] : memref<128x128xbf16, #tpu.memory_space<vmem>>, vector<128x128xbf16>
    %cst_14 = arith.constant dense<0.000000e+00> : vector<8x128xf32>
    %18 = tpu.matmul %16, %17, %cst_14 {dimension_numbers = #tpu.dot_dimension_numbers<[1], [0], [0], [1], [0, 0, 1, 1], [], []>} : vector<8x128xbf16>, vector<128x128xbf16>, vector<8x128xf32> -> vector<8x128xf32>
    %c0_15 = arith.constant 0 : index
    %c0_16 = arith.constant 0 : index
    %19 = vector.load %arg7[%c0_15, %c0_16] : memref<8x128xf32, #tpu.memory_space<vmem>>, vector<1x128xf32>
    %20 = vector.broadcast %19 : vector<1x128xf32> to vector<8x128xf32>
    %21 = arith.addf %18, %20 : vector<8x128xf32>
    %22 = math.tanh %21 : vector<8x128xf32>
    %cst_17 = arith.constant 2.000000e+00 : f32
    %23 = vector.broadcast %cst_17 : f32 to vector<8x128xf32>
    %24 = arith.mulf %23, %22 : vector<8x128xf32>
    %25 = arith.truncf %24 : vector<8x128xf32> to vector<8x128xbf16>
    %c0_18 = arith.constant 0 : index
    %c0_19 = arith.constant 0 : index
    %26 = vector.load %arg8[%c0_18, %c0_19] : memref<8x128xbf16, #tpu.memory_space<vmem>>, vector<8x128xbf16>
    tpu.vector_store %arg8[%c0_18, %c0_19], %25 {strides = array<i32>} : memref<8x128xbf16, #tpu.memory_space<vmem>>, vector<8x128xbf16>,
    return
  }
  func.func @transform_0(%arg0: i32) -> (i32, i32) {
    %c0_i32 = arith.constant 0 : i32
    %c0_i32_0 = arith.constant 0 : i32
    return %arg0, %c0_i32 : i32, i32
  }
  func.func @transform_1(%arg0: i32) -> (i32, i32) {
    %c0_i32 = arith.constant 0 : i32
    %c0_i32_0 = arith.constant 0 : i32
    %c0_i32_1 = arith.constant 0 : i32
    return %c0_i32, %c0_i32_0 : i32, i32
  }
  func.func @transform_2(%arg0: i32) -> (i32, i32) {
    %c0_i32 = arith.constant 0 : i32
    %c0_i32_0 = arith.constant 0 : i32
    %c0_i32_1 = arith.constant 0 : i32
    return %c0_i32, %c0_i32_0 : i32, i32
  }
  func.func @transform_3(%arg0: i32) -> (i32, i32) {
    %c0_i32 = arith.constant 0 : i32
    %c0_i32_0 = arith.constant 0 : i32
    %c0_i32_1 = arith.constant 0 : i32
    return %c0_i32, %c0_i32_0 : i32, i32
  }
  func.func @transform_4(%arg0: i32) -> (i32, i32) {
    %c0_i32 = arith.constant 0 : i32
    %c0_i32_0 = arith.constant 0 : i32
    %c0_i32_1 = arith.constant 0 : i32
    return %c0_i32, %c0_i32_0 : i32, i32
  }
  func.func @transform_5(%arg0: i32) -> (i32, i32) {
    %c0_i32 = arith.constant 0 : i32
    %c0_i32_0 = arith.constant 0 : i32
    %c0_i32_1 = arith.constant 0 : i32
    return %c0_i32, %c0_i32_0 : i32, i32
  }
  func.func @transform_6(%arg0: i32) -> (i32, i32) {
    %c0_i32 = arith.constant 0 : i32
    %c0_i32_0 = arith.constant 0 : i32
    %c0_i32_1 = arith.constant 0 : i32
    return %c0_i32, %c0_i32_0 : i32, i32
  }
  func.func @transform_7(%arg0: i32) -> (i32, i32) {
    %c0_i32 = arith.constant 0 : i32
    %c0_i32_0 = arith.constant 0 : i32
    return %arg0, %c0_i32 : i32, i32
  }
}

module attributes {stable_mosaic.version = 11 : i64} {
  func.func @_actor_kernel(%arg0: i32, %arg1: memref<8x128xbf16, #tpu.memory_space<vmem>>, %arg2: memref<128x128xbf16, #tpu.memory_space<vmem>>, %arg3: memref<8x128xf32, #tpu.memory_space<vmem>>, %arg4: memref<128x128xbf16, #tpu.memory_space<vmem>>, %arg5: memref<8x128xf32, #tpu.memory_space<vmem>>, %arg6: memref<128x128xbf16, #tpu.memory_space<vmem>>, %arg7: memref<8x128xf32, #tpu.memory_space<vmem>>, %arg8: memref<8x128xbf16, #tpu.memory_space<vmem>>) attributes {dimension_semantics = [#tpu.dimension_semantics<parallel>], iteration_bounds = array<i64: 1>, scalar_prefetch = 0 : i64, scratch_operands = 0 : i64, tpu.core_type = #tpu.core_type<tc>, window_params = [{transform_indices = @transform_0, window_bounds = array<i64: 8, 128>}, {pipeline_mode = #tpu.pipeline_mode<synchronous>, transform_indices = @transform_1, window_bounds = array<i64: 128, 128>}, {pipeline_mode = #tpu.pipeline_mode<synchronous>, transform_indices = @transform_2, window_bounds = array<i64: 8, 128>}, {pipeline_mode = #tpu.pipeline_mode<synchronous>, transform_indices = @transform_3, window_bounds = array<i64: 128, 128>}, {pipeline_mode = #tpu.pipeline_mode<synchronous>, transform_indices = @transform_4, window_bounds = array<i64: 8, 128>}, {pipeline_mode = #tpu.pipeline_mode<synchronous>, transform_indices = @transform_5, window_bounds = array<i64: 128, 128>}, {pipeline_mode = #tpu.pipeline_mode<synchronous>, transform_indices = @transform_6, window_bounds = array<i64: 8, 128>}, {transform_indices = @transform_7, window_bounds = array<i64: 8, 128>}]} {
    %c0 = arith.constant 0 : index
    %c0_0 = arith.constant 0 : index
    %0 = vector.load %arg1[%c0, %c0_0] : memref<8x128xbf16, #tpu.memory_space<vmem>>, vector<8x128xbf16>
    %c0_1 = arith.constant 0 : index
    %c0_2 = arith.constant 0 : index
    %1 = vector.load %arg2[%c0_1, %c0_2] : memref<128x128xbf16, #tpu.memory_space<vmem>>, vector<128x128xbf16>
    %cst = arith.constant dense<0.000000e+00> : vector<8x128xf32>
    %2 = tpu.matmul %0, %1, %cst {dimension_numbers = #tpu.dot_dimension_numbers<[1], [0], [0], [1], [0, 0, 1, 1], [], []>} : vector<8x128xbf16>, vector<128x128xbf16>, vector<8x128xf32> -> vector<8x128xf32>
    %c0_3 = arith.constant 0 : index
    %c0_4 = arith.constant 0 : index
    %3 = vector.load %arg3[%c0_3, %c0_4] : memref<8x128xf32, #tpu.memory_space<vmem>>, vector<1x128xf32>
    %4 = vector.broadcast %3 : vector<1x128xf32> to vector<8x128xf32>
    %5 = arith.addf %2, %4 : vector<8x128xf32>
    %cst_5 = arith.constant 0.000000e+00 : f32
    %6 = vector.broadcast %cst_5 : f32 to vector<8x128xf32>
    %7 = arith.maximumf %5, %6 : vector<8x128xf32>
    %8 = arith.truncf %7 : vector<8x128xf32> to vector<8x128xbf16>
    %c0_6 = arith.constant 0 : index
    %c0_7 = arith.constant 0 : index
    %9 = vector.load %arg4[%c0_6, %c0_7] : memref<128x128xbf16, #tpu.memory_space<vmem>>, vector<128x128xbf16>
    %cst_8 = arith.constant dense<0.000000e+00> : vector<8x128xf32>
    %10 = tpu.matmul %8, %9, %cst_8 {dimension_numbers = #tpu.dot_dimension_numbers<[1], [0], [0], [1], [0, 0, 1, 1], [], []>} : vector<8x128xbf16>, vector<128x128xbf16>, vector<8x128xf32> -> vector<8x128xf32>
    %c0_9 = arith.constant 0 : index
    %c0_10 = arith.constant 0 : index
    %11 = vector.load %arg5[%c0_9, %c0_10] : memref<8x128xf32, #tpu.memory_space<vmem>>, vector<1x128xf32>
    %12 = vector.broadcast %11 : vector<1x128xf32> to vector<8x128xf32>
    %13 = arith.addf %10, %12 : vector<8x128xf32>
    %cst_11 = arith.constant 0.000000e+00 : f32
    %14 = vector.broadcast %cst_11 : f32 to vector<8x128xf32>
    %15 = arith.maximumf %13, %14 : vector<8x128xf32>
    %16 = arith.truncf %15 : vector<8x128xf32> to vector<8x128xbf16>
    %c0_12 = arith.constant 0 : index
    %c0_13 = arith.constant 0 : index
    %17 = vector.load %arg6[%c0_12, %c0_13] : memref<128x128xbf16, #tpu.memory_space<vmem>>, vector<128x128xbf16>
    %cst_14 = arith.constant dense<0.000000e+00> : vector<8x128xf32>
    %18 = tpu.matmul %16, %17, %cst_14 {dimension_numbers = #tpu.dot_dimension_numbers<[1], [0], [0], [1], [0, 0, 1, 1], [], []>} : vector<8x128xbf16>, vector<128x128xbf16>, vector<8x128xf32> -> vector<8x128xf32>
    %c0_15 = arith.constant 0 : index
    %c0_16 = arith.constant 0 : index
    %19 = vector.load %arg7[%c0_15, %c0_16] : memref<8x128xf32, #tpu.memory_space<vmem>>, vector<1x128xf32>
    %20 = vector.broadcast %19 : vector<1x128xf32> to vector<8x128xf32>
    %21 = arith.addf %18, %20 : vector<8x128xf32>
    %22 = math.tanh %21 : vector<8x128xf32>
    %cst_17 = arith.constant 2.000000e+00 : f32
    %23 = vector.broadcast %cst_17 : f32 to vector<8x128xf32>
    %24 = arith.mulf %23, %22 : vector<8x128xf32>
    %25 = arith.truncf %24 : vector<8x128xf32> to vector<8x128xbf16>
    %c0_18 = arith.constant 0 : index
    %c0_19 = arith.constant 0 : index
    %26 = vector.load %arg8[%c0_18, %c0_19] : memref<8x128xbf16, #tpu.memory_space<vmem>>, vector<8x128xbf16>
    tpu.vector_store %arg8[%c0_18, %c0_19], %25 {strides = array<i32>} : memref<8x128xbf16, #tpu.memory_space<vmem>>, vector<8x128xbf16>,
    return
  }
  func.func @transform_0(%arg0: i32) -> (i32, i32) {
    %c0_i32 = arith.constant 0 : i32
    %c0_i32_0 = arith.constant 0 : i32
    return %arg0, %c0_i32 : i32, i32
  }
  func.func @transform_1(%arg0: i32) -> (i32, i32) {
    %c0_i32 = arith.constant 0 : i32
    %c0_i32_0 = arith.constant 0 : i32
    %c0_i32_1 = arith.constant 0 : i32
    return %c0_i32, %c0_i32_0 : i32, i32
  }
  func.func @transform_2(%arg0: i32) -> (i32, i32) {
    %c0_i32 = arith.constant 0 : i32
    %c0_i32_0 = arith.constant 0 : i32
    %c0_i32_1 = arith.constant 0 : i32
    return %c0_i32, %c0_i32_0 : i32, i32
  }
  func.func @transform_3(%arg0: i32) -> (i32, i32) {
    %c0_i32 = arith.constant 0 : i32
    %c0_i32_0 = arith.constant 0 : i32
    %c0_i32_1 = arith.constant 0 : i32
    return %c0_i32, %c0_i32_0 : i32, i32
  }
  func.func @transform_4(%arg0: i32) -> (i32, i32) {
    %c0_i32 = arith.constant 0 : i32
    %c0_i32_0 = arith.constant 0 : i32
    %c0_i32_1 = arith.constant 0 : i32
    return %c0_i32, %c0_i32_0 : i32, i32
  }
  func.func @transform_5(%arg0: i32) -> (i32, i32) {
    %c0_i32 = arith.constant 0 : i32
    %c0_i32_0 = arith.constant 0 : i32
    %c0_i32_1 = arith.constant 0 : i32
    return %c0_i32, %c0_i32_0 : i32, i32
  }
  func.func @transform_6(%arg0: i32) -> (i32, i32) {
    %c0_i32 = arith.constant 0 : i32
    %c0_i32_0 = arith.constant 0 : i32
    %c0_i32_1 = arith.constant 0 : i32
    return %c0_i32, %c0_i32_0 : i32, i32
  }
  func.func @transform_7(%arg0: i32) -> (i32, i32) {
    %c0_i32 = arith.constant 0 : i32
    %c0_i32_0 = arith.constant 0 : i32
    return %arg0, %c0_i32 : i32, i32
  }
}

</mosaic_0001>

<llo_original>
// kernel: tpu_custom_call.1
$region0: #{tpu_custom_call.1}
  #allocation0 [shape = 'u32[]', space=smem, size = 0x4, offset = 0x4, fixed_abs, tag = 'smem constant byte address 0x4 - core index']
  #allocation1 [shape = 'u32[144,128]{1,0:T(1,128)}', space=vmem, size = 0x12000, scoped, tag = 'internal scratch']
  %s0 = inlined_call_operand.hbm [shape: bf16[8,128], index: 0, kind: input, shape index: {}]
  %s1 = inlined_call_operand.hbm [shape: bf16[128,128], index: 1, kind: input, shape index: {}]
  %s2 = inlined_call_operand.hbm [shape: f32[8,128], index: 2, kind: input, shape index: {}]
  %s3 = inlined_call_operand.hbm [shape: bf16[128,128], index: 3, kind: input, shape index: {}]
  %s4 = inlined_call_operand.hbm [shape: f32[8,128], index: 4, kind: input, shape index: {}]
  %s5 = inlined_call_operand.hbm [shape: bf16[128,128], index: 5, kind: input, shape index: {}]
  %s6 = inlined_call_operand.vmem [shape: f32[8,128], index: 6, kind: input, shape index: {}]
  %s7 = inlined_call_operand.hbm [shape: bf16[8,128], index: 7, kind: output, shape index: {}]
  %s8 = sld [smem:[#allocation0]]
  $region62: #{tpu_custom_call.1} parent=0
    _
  %s10 = ssub.s32 1, %s8
  %s11 = scalar_select 0, %s10, %s8
  $region1: #{tpu_custom_call.1} parent=0
    #allocation2 [shape = 'u8[2048]{0}', space=vmem, size = 0x800, scoped, tag = 'input window, operand 0, single buffered']
    #allocation3 [shape = 's32[1]{0}', space=sflag, size = 0x4, scoped, tag = 'scoped memory for tpu_custom_call.1']
    #allocation4 [shape = 's32[1]{0}', space=sflag, size = 0x4, scoped, tag = 'scoped memory for tpu_custom_call.1']
    #allocation5 [shape = 'u8[32768]{0}', space=vmem, size = 0x8000, scoped, tag = 'input window, operand 1, single buffered']
    #allocation6 [shape = 's32[1]{0}', space=sflag, size = 0x4, scoped, tag = 'scoped memory for tpu_custom_call.1']
    #allocation7 [shape = 'u8[4096]{0}', space=vmem, size = 0x1000, scoped, tag = 'input window, operand 2, single buffered']
    #allocation8 [shape = 'u8[32768]{0}', space=vmem, size = 0x8000, scoped, tag = 'input window, operand 3, single buffered']
    #allocation9 [shape = 's32[1]{0}', space=sflag, size = 0x4, scoped, tag = 'scoped memory for tpu_custom_call.1']
    #allocation10 [shape = 'u8[4096]{0}', space=vmem, size = 0x1000, scoped, tag = 'input window, operand 4, single buffered']
    #allocation11 [shape = 'u8[32768]{0}', space=vmem, size = 0x8000, scoped, tag = 'input window, operand 5, single buffered']
    #allocation12 [shape = 's32[1]{0}', space=sflag, size = 0x4, scoped, tag = 'scoped memory for tpu_custom_call.1']
    #allocation13 [shape = 'u8[2048]{0}', space=vmem, size = 0x800, scoped, tag = 'output window, operand 0, single buffered']
    %12 = vsyncpa [#allocation3], 0
    %13 = vsyncpa [#allocation6], 0
    %14 = vsyncpa [#allocation9], 0
    %15 = vsyncpa [#allocation12], 0
    %16 = vsyncpa [#allocation4], 0
    // Predicated region
    $region2: #{tpu_custom_call.1} parent=1 // pred_check
      _
    $region3: #{tpu_custom_call.1} parent=1 // pred_check_branch
      %18 = sbr.rel (0) target = $region5
    $region4: #{tpu_custom_call.1} parent=1 // pred_region
      %s20 = ssub.s32 64, 64
      %21 = vsyncadd [#allocation3], %s20
      %s23 = sshll.u32 [#allocation2], 4
      %s24 = int_to_ptr.vmem [resolvable:$true] %s23
      %26 = dma.hbm_to_vmem [thread:$0]  %s0, 64, %s24, [#allocation3]
    $region5: #{tpu_custom_call.1} parent=1 // pred_fallthru
      _
    // Predicated region
    $region6: #{tpu_custom_call.1} parent=1 // pred_check
      _
    $region7: #{tpu_custom_call.1} parent=1 // pred_check_branch
      %28 = sbr.rel (0) target = $region9
    $region8: #{tpu_custom_call.1} parent=1 // pred_region
      %s30 = ssub.s32 1024, 1024
      %31 = vsyncadd [#allocation6], %s30
      %s32 = sshll.u32 [#allocation5], 4
      %s33 = int_to_ptr.vmem [resolvable:$true] %s32
      %38 = dma.hbm_to_vmem [thread:$0]  %s1, 1024, %s33, [#allocation6], 64, 64, 4
    $region9: #{tpu_custom_call.1} parent=1 // pred_fallthru
      _
    // Predicated region
    $region10: #{tpu_custom_call.1} parent=1 // pred_check
      _
    $region11: #{tpu_custom_call.1} parent=1 // pred_check_branch
      %40 = sbr.rel (0) target = $region13
    $region12: #{tpu_custom_call.1} parent=1 // pred_region
      %s42 = ssub.s32 128, 128
      %43 = vsyncadd [#allocation6], %s42
      %s45 = sshll.u32 [#allocation7], 4
      %s46 = int_to_ptr.vmem [resolvable:$true] %s45
      %48 = dma.hbm_to_vmem [thread:$0]  %s2, 128, %s46, [#allocation6]
    $region13: #{tpu_custom_call.1} parent=1 // pred_fallthru
      _
    // Predicated region
    $region14: #{tpu_custom_call.1} parent=1 // pred_check
      _
    $region15: #{tpu_custom_call.1} parent=1 // pred_check_branch
      %50 = sbr.rel (0) target = $region17
    $region16: #{tpu_custom_call.1} parent=1 // pred_region
      %s52 = ssub.s32 1024, 1024
      %53 = vsyncadd [#allocation9], %s52
      %s54 = sshll.u32 [#allocation8], 4
      %s55 = int_to_ptr.vmem [resolvable:$true] %s54
      %60 = dma.hbm_to_vmem [thread:$0]  %s3, 1024, %s55, [#allocation9], 64, 64, 4
    $region17: #{tpu_custom_call.1} parent=1 // pred_fallthru
      _
    // Predicated region
    $region18: #{tpu_custom_call.1} parent=1 // pred_check
      _
    $region19: #{tpu_custom_call.1} parent=1 // pred_check_branch
      %62 = sbr.rel (0) target = $region21
    $region20: #{tpu_custom_call.1} parent=1 // pred_region
      %s64 = ssub.s32 128, 128
      %65 = vsyncadd [#allocation9], %s64
      %s67 = sshll.u32 [#allocation10], 4
      %s68 = int_to_ptr.vmem [resolvable:$true] %s67
      %70 = dma.hbm_to_vmem [thread:$0]  %s4, 128, %s68, [#allocation9]
    $region21: #{tpu_custom_call.1} parent=1 // pred_fallthru
      _
    // Predicated region
    $region22: #{tpu_custom_call.1} parent=1 // pred_check
      _
    $region23: #{tpu_custom_call.1} parent=1 // pred_check_branch
      %72 = sbr.rel (0) target = $region25
    $region24: #{tpu_custom_call.1} parent=1 // pred_region
      %s74 = ssub.s32 1024, 1024
      %75 = vsyncadd [#allocation12], %s74
      %s76 = sshll.u32 [#allocation11], 4
      %s77 = int_to_ptr.vmem [resolvable:$true] %s76
      %82 = dma.hbm_to_vmem [thread:$0]  %s5, 1024, %s77, [#allocation12], 64, 64, 4
    $region25: #{tpu_custom_call.1} parent=1 // pred_fallthru
      _
    // Predicated region
    $region26: #{tpu_custom_call.1} parent=1 // pred_check
      _
    $region27: #{tpu_custom_call.1} parent=1 // pred_check_branch
      %84 = sbr.rel (0) target = $region29
    $region28: #{tpu_custom_call.1} parent=1 // pred_region
      _
    $region29: #{tpu_custom_call.1} parent=1 // pred_fallthru
      _
    // Predicated region
    $region30: #{tpu_custom_call.1} parent=1 // pred_check
      _
    $region31: #{tpu_custom_call.1} parent=1 // pred_check_branch
      %86 = sbr.rel (0) target = $region33
    $region32: #{tpu_custom_call.1} parent=1 // pred_region
      %87 = dma.done [#allocation3], 64
    $region33: #{tpu_custom_call.1} parent=1 // pred_fallthru
      _
    // Predicated region
    $region34: #{tpu_custom_call.1} parent=1 // pred_check
      _
    $region35: #{tpu_custom_call.1} parent=1 // pred_check_branch
      %89 = sbr.rel (0) target = $region37
    $region36: #{tpu_custom_call.1} parent=1 // pred_region
      %90 = dma.done [#allocation6], 1024
    $region37: #{tpu_custom_call.1} parent=1 // pred_fallthru
      _
    // Predicated region
    $region38: #{tpu_custom_call.1} parent=1 // pred_check
      _
    $region39: #{tpu_custom_call.1} parent=1 // pred_check_branch
      %92 = sbr.rel (0) target = $region41
    $region40: #{tpu_custom_call.1} parent=1 // pred_region
      %93 = dma.done [#allocation6], 128
    $region41: #{tpu_custom_call.1} parent=1 // pred_fallthru
      _
    // Predicated region
    $region42: #{tpu_custom_call.1} parent=1 // pred_check
      _
    $region43: #{tpu_custom_call.1} parent=1 // pred_check_branch
      %95 = sbr.rel (0) target = $region45
    $region44: #{tpu_custom_call.1} parent=1 // pred_region
      %96 = dma.done [#allocation9], 1024
    $region45: #{tpu_custom_call.1} parent=1 // pred_fallthru
      _
    // Predicated region
    $region46: #{tpu_custom_call.1} parent=1 // pred_check
      _
    $region47: #{tpu_custom_call.1} parent=1 // pred_check_branch
      %98 = sbr.rel (0) target = $region49
    $region48: #{tpu_custom_call.1} parent=1 // pred_region
      %99 = dma.done [#allocation9], 128
    $region49: #{tpu_custom_call.1} parent=1 // pred_fallthru
      _
    // Predicated region
    $region50: #{tpu_custom_call.1} parent=1 // pred_check
      _
    $region51: #{tpu_custom_call.1} parent=1 // pred_check_branch
      %101 = sbr.rel (0) target = $region53
    $region52: #{tpu_custom_call.1} parent=1 // pred_region
      %102 = dma.done [#allocation12], 1024
    $region53: #{tpu_custom_call.1} parent=1 // pred_fallthru
      _
    %v104 = vld [vmem:[#allocation2] sm:$0xf]
    %v105 = vld [vmem:[#allocation5] sm:$0xf]
    %v106 = vld [vmem:[#allocation5 + $0x4] sm:$0xf]
    %v107 = vld [vmem:[#allocation5 + $0x8] sm:$0xf]
    %v108 = vld [vmem:[#allocation5 + $0xc] sm:$0xf]
    %v109 = vld [vmem:[#allocation5 + $0x10] sm:$0xf]
    %v110 = vld [vmem:[#allocation5 + $0x14] sm:$0xf]
    %v111 = vld [vmem:[#allocation5 + $0x18] sm:$0xf]
    %v112 = vld [vmem:[#allocation5 + $0x1c] sm:$0xf]
    %v113 = vld [vmem:[#allocation5 + $0x20] sm:$0xf]
    %v114 = vld [vmem:[#allocation5 + $0x24] sm:$0xf]
    %v115 = vld [vmem:[#allocation5 + $0x28] sm:$0xf]
    %v116 = vld [vmem:[#allocation5 + $0x2c] sm:$0xf]
    %v117 = vld [vmem:[#allocation5 + $0x30] sm:$0xf]
    %v118 = vld [vmem:[#allocation5 + $0x34] sm:$0xf]
    %v119 = vld [vmem:[#allocation5 + $0x38] sm:$0xf]
    %v120 = vld [vmem:[#allocation5 + $0x3c] sm:$0xf]
    %v121 = vld [vmem:[#allocation7] sm:$0x1]
    %v122 = vlaneseq
    %v123 = vshrl.u32 %v122, 7
    %v124 = vsub.s32 0, %v123
    %v125 = vrot.slane %v121, %v124
    %v142 = vunpack.c.l.b16 %v105
    %v143 = vunpack.c.l.b16 %v106
    %v144 = vunpack.c.l.b16 %v107
    %v145 = vunpack.c.l.b16 %v108
    %v146 = vunpack.c.l.b16 %v109
    %v147 = vunpack.c.l.b16 %v110
    %v148 = vunpack.c.l.b16 %v111
    %v149 = vunpack.c.l.b16 %v112
    %v150 = vunpack.c.l.b16 %v113
    %v151 = vunpack.c.l.b16 %v114
    %v152 = vunpack.c.l.b16 %v115
    %v153 = vunpack.c.l.b16 %v116
    %v154 = vunpack.c.l.b16 %v117
    %v155 = vunpack.c.l.b16 %v118
    %v156 = vunpack.c.l.b16 %v119
    %v157 = vunpack.c.l.b16 %v120
    %v158 = vpack.c.b16 %v143, %v142
    %v159 = vpack.c.b16 %v145, %v144
    %v160 = vpack.c.b16 %v147, %v146
    %v161 = vpack.c.b16 %v149, %v148
    %v162 = vpack.c.b16 %v151, %v150
    %v163 = vpack.c.b16 %v153, %v152
    %v164 = vpack.c.b16 %v155, %v154
    %v165 = vpack.c.b16 %v157, %v156
    %174 = vmatprep.subr.bf16.mxu0 0
    %175 = vmatpush1.bf16.msra.mxu0 %v165
    %176 = vmatprep.subr.bf16.mxu0 0
    %177 = vmatpush1.bf16.msra.mxu0 %v164
    %178 = vmatprep.subr.bf16.mxu0 0
    %179 = vmatpush1.bf16.msra.mxu0 %v163
    %180 = vmatprep.subr.bf16.mxu0 0
    %181 = vmatpush1.bf16.msra.mxu0 %v162
    %182 = vmatprep.subr.bf16.mxu0 0
    %183 = vmatpush1.bf16.msra.mxu0 %v161
    %184 = vmatprep.subr.bf16.mxu0 0
    %185 = vmatpush1.bf16.msra.mxu0 %v160
    %186 = vmatprep.subr.bf16.mxu0 0
    %187 = vmatpush1.bf16.msra.mxu0 %v159
    %188 = vmatprep.subr.bf16.mxu0 0
    %189 = vmatpush1.bf16.msra.mxu0 %v158
    %190 = vmatprep.subr.bf16.mxu0 0
    %191 = vmatpush2.bf16.msra.mxu0 0
    %192 = vmatprep.subr.bf16.mxu0 0
    %193 = vmatpush2.bf16.msra.mxu0 0
    %194 = vmatprep.subr.bf16.mxu0 0
    %195 = vmatpush2.bf16.msra.mxu0 0
    %196 = vmatprep.subr.bf16.mxu0 0
    %197 = vmatpush2.bf16.msra.mxu0 0
    %198 = vmatprep.subr.bf16.mxu0 0
    %199 = vmatpush2.bf16.msra.mxu0 0
    %200 = vmatprep.subr.bf16.mxu0 0
    %201 = vmatpush2.bf16.msra.mxu0 0
    %202 = vmatprep.subr.bf16.mxu0 0
    %203 = vmatpush2.bf16.msra.mxu0 0
    %204 = vmatprep.subr.bf16.mxu0 0
    %205 = vmatpush2.bf16.msra.mxu0 0
    %206 = vmatprep.mubr.bf16.mxu0 0
    %207 = vmatmul.mubr.bf16.gmra.mxu0 %v104
    %v208 = vpop.f32.mrf.mxu0
    %v209 = vadd.f32 %v125, %v208
    %v210 = vpop.f32.mrf.mxu0
    %v211 = vpop.f32.mrf.mxu0
    %v212 = vpop.f32.mrf.mxu0
    %213 = vdwg.mxu0
    %v214 = vmax.f32 %v209, 0.0
    %v215 = vpack.c.bf16 %v214, %v214
    %v216 = vld [vmem:[#allocation8] sm:$0xf]
    %v217 = vld [vmem:[#allocation8 + $0x4] sm:$0xf]
    %v218 = vld [vmem:[#allocation8 + $0x8] sm:$0xf]
    %v219 = vld [vmem:[#allocation8 + $0xc] sm:$0xf]
    %v220 = vld [vmem:[#allocation8 + $0x10] sm:$0xf]
    %v221 = vld [vmem:[#allocation8 + $0x14] sm:$0xf]
    %v222 = vld [vmem:[#allocation8 + $0x18] sm:$0xf]
    %v223 = vld [vmem:[#allocation8 + $0x1c] sm:$0xf]
    %v224 = vld [vmem:[#allocation8 + $0x20] sm:$0xf]
    %v225 = vld [vmem:[#allocation8 + $0x24] sm:$0xf]
    %v226 = vld [vmem:[#allocation8 + $0x28] sm:$0xf]
    %v227 = vld [vmem:[#allocation8 + $0x2c] sm:$0xf]
    %v228 = vld [vmem:[#allocation8 + $0x30] sm:$0xf]
    %v229 = vld [vmem:[#allocation8 + $0x34] sm:$0xf]
    %v230 = vld [vmem:[#allocation8 + $0x38] sm:$0xf]
    %v231 = vld [vmem:[#allocation8 + $0x3c] sm:$0xf]
    %v232 = vld [vmem:[#allocation10] sm:$0x1]
    %v233 = vlaneseq
    %v234 = vshrl.u32 %v233, 7
    %v235 = vsub.s32 0, %v234
    %v236 = vrot.slane %v232, %v235
    %v253 = vunpack.c.l.b16 %v216
    %v254 = vunpack.c.l.b16 %v217
    %v255 = vunpack.c.l.b16 %v218
    %v256 = vunpack.c.l.b16 %v219
    %v257 = vunpack.c.l.b16 %v220
    %v258 = vunpack.c.l.b16 %v221
    %v259 = vunpack.c.l.b16 %v222
    %v260 = vunpack.c.l.b16 %v223
    %v261 = vunpack.c.l.b16 %v224
    %v262 = vunpack.c.l.b16 %v225
    %v263 = vunpack.c.l.b16 %v226
    %v264 = vunpack.c.l.b16 %v227
    %v265 = vunpack.c.l.b16 %v228
    %v266 = vunpack.c.l.b16 %v229
    %v267 = vunpack.c.l.b16 %v230
    %v268 = vunpack.c.l.b16 %v231
    %v269 = vpack.c.b16 %v254, %v253
    %v270 = vpack.c.b16 %v256, %v255
    %v271 = vpack.c.b16 %v258, %v257
    %v272 = vpack.c.b16 %v260, %v259
    %v273 = vpack.c.b16 %v262, %v261
    %v274 = vpack.c.b16 %v264, %v263
    %v275 = vpack.c.b16 %v266, %v265
    %v276 = vpack.c.b16 %v268, %v267
    %285 = vmatprep.subr.bf16.mxu0 0
    %286 = vmatpush1.bf16.msra.mxu0 %v276
    %287 = vmatprep.subr.bf16.mxu0 0
    %288 = vmatpush1.bf16.msra.mxu0 %v275
    %289 = vmatprep.subr.bf16.mxu0 0
    %290 = vmatpush1.bf16.msra.mxu0 %v274
    %291 = vmatprep.subr.bf16.mxu0 0
    %292 = vmatpush1.bf16.msra.mxu0 %v273
    %293 = vmatprep.subr.bf16.mxu0 0
    %294 = vmatpush1.bf16.msra.mxu0 %v272
    %295 = vmatprep.subr.bf16.mxu0 0
    %296 = vmatpush1.bf16.msra.mxu0 %v271
    %297 = vmatprep.subr.bf16.mxu0 0
    %298 = vmatpush1.bf16.msra.mxu0 %v270
    %299 = vmatprep.subr.bf16.mxu0 0
    %300 = vmatpush1.bf16.msra.mxu0 %v269
    %301 = vmatprep.subr.bf16.mxu0 0
    %302 = vmatpush2.bf16.msra.mxu0 0
    %303 = vmatprep.subr.bf16.mxu0 0
    %304 = vmatpush2.bf16.msra.mxu0 0
    %305 = vmatprep.subr.bf16.mxu0 0
    %306 = vmatpush2.bf16.msra.mxu0 0
    %307 = vmatprep.subr.bf16.mxu0 0
    %308 = vmatpush2.bf16.msra.mxu0 0
    %309 = vmatprep.subr.bf16.mxu0 0
    %310 = vmatpush2.bf16.msra.mxu0 0
    %311 = vmatprep.subr.bf16.mxu0 0
    %312 = vmatpush2.bf16.msra.mxu0 0
    %313 = vmatprep.subr.bf16.mxu0 0
    %314 = vmatpush2.bf16.msra.mxu0 0
    %315 = vmatprep.subr.bf16.mxu0 0
    %316 = vmatpush2.bf16.msra.mxu0 0
    %317 = vmatprep.mubr.bf16.mxu0 0
    %318 = vmatmul.mubr.bf16.gmra.mxu0 %v215
    %v319 = vpop.f32.mrf.mxu0
    %v320 = vadd.f32 %v236, %v319
    %v321 = vpop.f32.mrf.mxu0
    %v322 = vpop.f32.mrf.mxu0
    %v323 = vpop.f32.mrf.mxu0
    %324 = vdwg.mxu0
    %v325 = vmax.f32 %v320, 0.0
    %v326 = vpack.c.bf16 %v325, %v325
    %v327 = vld [vmem:[#allocation11] sm:$0xf]
    %v328 = vld [vmem:[#allocation11 + $0x4] sm:$0xf]
    %v329 = vld [vmem:[#allocation11 + $0x8] sm:$0xf]
    %v330 = vld [vmem:[#allocation11 + $0xc] sm:$0xf]
    %v331 = vld [vmem:[#allocation11 + $0x10] sm:$0xf]
    %v332 = vld [vmem:[#allocation11 + $0x14] sm:$0xf]
    %v333 = vld [vmem:[#allocation11 + $0x18] sm:$0xf]
    %v334 = vld [vmem:[#allocation11 + $0x1c] sm:$0xf]
    %v335 = vld [vmem:[#allocation11 + $0x20] sm:$0xf]
    %v336 = vld [vmem:[#allocation11 + $0x24] sm:$0xf]
    %v337 = vld [vmem:[#allocation11 + $0x28] sm:$0xf]
    %v338 = vld [vmem:[#allocation11 + $0x2c] sm:$0xf]
    %v339 = vld [vmem:[#allocation11 + $0x30] sm:$0xf]
    %v340 = vld [vmem:[#allocation11 + $0x34] sm:$0xf]
    %v341 = vld [vmem:[#allocation11 + $0x38] sm:$0xf]
    %v342 = vld [vmem:[#allocation11 + $0x3c] sm:$0xf]
    %v343 = vld [vmem:[%s6] sm:$0x1]
    %v344 = vlaneseq
    %v345 = vshrl.u32 %v344, 7
    %v346 = vsub.s32 0, %v345
    %v347 = vrot.slane %v343, %v346
    %v364 = vunpack.c.l.b16 %v327
    %v365 = vunpack.c.l.b16 %v328
    %v366 = vunpack.c.l.b16 %v329
    %v367 = vunpack.c.l.b16 %v330
    %v368 = vunpack.c.l.b16 %v331
    %v369 = vunpack.c.l.b16 %v332
    %v370 = vunpack.c.l.b16 %v333
    %v371 = vunpack.c.l.b16 %v334
    %v372 = vunpack.c.l.b16 %v335
    %v373 = vunpack.c.l.b16 %v336
    %v374 = vunpack.c.l.b16 %v337
    %v375 = vunpack.c.l.b16 %v338
    %v376 = vunpack.c.l.b16 %v339
    %v377 = vunpack.c.l.b16 %v340
    %v378 = vunpack.c.l.b16 %v341
    %v379 = vunpack.c.l.b16 %v342
    %v380 = vpack.c.b16 %v365, %v364
    %v381 = vpack.c.b16 %v367, %v366
    %v382 = vpack.c.b16 %v369, %v368
    %v383 = vpack.c.b16 %v371, %v370
    %v384 = vpack.c.b16 %v373, %v372
    %v385 = vpack.c.b16 %v375, %v374
    %v386 = vpack.c.b16 %v377, %v376
    %v387 = vpack.c.b16 %v379, %v378
    %396 = vmatprep.subr.bf16.mxu0 0
    %397 = vmatpush1.bf16.msra.mxu0 %v387
    %398 = vmatprep.subr.bf16.mxu0 0
    %399 = vmatpush1.bf16.msra.mxu0 %v386
    %400 = vmatprep.subr.bf16.mxu0 0
    %401 = vmatpush1.bf16.msra.mxu0 %v385
    %402 = vmatprep.subr.bf16.mxu0 0
    %403 = vmatpush1.bf16.msra.mxu0 %v384
    %404 = vmatprep.subr.bf16.mxu0 0
    %405 = vmatpush1.bf16.msra.mxu0 %v383
    %406 = vmatprep.subr.bf16.mxu0 0
    %407 = vmatpush1.bf16.msra.mxu0 %v382
    %408 = vmatprep.subr.bf16.mxu0 0
    %409 = vmatpush1.bf16.msra.mxu0 %v381
    %410 = vmatprep.subr.bf16.mxu0 0
    %411 = vmatpush1.bf16.msra.mxu0 %v380
    %412 = vmatprep.subr.bf16.mxu0 0
    %413 = vmatpush2.bf16.msra.mxu0 0
    %414 = vmatprep.subr.bf16.mxu0 0
    %415 = vmatpush2.bf16.msra.mxu0 0
    %416 = vmatprep.subr.bf16.mxu0 0
    %417 = vmatpush2.bf16.msra.mxu0 0
    %418 = vmatprep.subr.bf16.mxu0 0
    %419 = vmatpush2.bf16.msra.mxu0 0
    %420 = vmatprep.subr.bf16.mxu0 0
    %421 = vmatpush2.bf16.msra.mxu0 0
    %422 = vmatprep.subr.bf16.mxu0 0
    %423 = vmatpush2.bf16.msra.mxu0 0
    %424 = vmatprep.subr.bf16.mxu0 0
    %425 = vmatpush2.bf16.msra.mxu0 0
    %426 = vmatprep.subr.bf16.mxu0 0
    %427 = vmatpush2.bf16.msra.mxu0 0
    %428 = vmatprep.mubr.bf16.mxu0 0
    %429 = vmatmul.mubr.bf16.gmra.mxu0 %v326
    %v430 = vpop.f32.mrf.mxu0
    %v431 = vadd.f32 %v347, %v430
    %v432 = vpop.f32.mrf.mxu0
    %v433 = vpop.f32.mrf.mxu0
    %v434 = vpop.f32.mrf.mxu0
    %435 = vdwg.mxu0
    %v436 = vtanh.pop %v431
    %v437 = vmul.f32 %v436, 2.0
    %v438 = vpack.c.bf16 %v437, %v437
    %439 = vst [vmem:[#allocation13] sm:$0xf] %v438
    // Predicated region
    $region54: #{tpu_custom_call.1} parent=1 // pred_check
      _
    $region55: #{tpu_custom_call.1} parent=1 // pred_check_branch
      %441 = sbr.rel (0) target = $region57
    $region56: #{tpu_custom_call.1} parent=1 // pred_region
      %s443 = ssub.s32 64, 64
      %444 = vsyncadd [#allocation4], %s443
      %s446 = sshll.u32 [#allocation13], 4
      %s447 = int_to_ptr.vmem [resolvable:$true] %s446
      %449 = dma.vmem_to_hbm [thread:$0]  %s447, 64, %s7, [#allocation4]
    $region57: #{tpu_custom_call.1} parent=1 // pred_fallthru
      _
    // Predicated region
    $region58: #{tpu_custom_call.1} parent=1 // pred_check
      _
    $region59: #{tpu_custom_call.1} parent=1 // pred_check_branch
      %451 = sbr.rel (0) target = $region61
    $region60: #{tpu_custom_call.1} parent=1 // pred_region
      %452 = dma.done [#allocation4], 64
    $region61: #{tpu_custom_call.1} parent=1 // pred_fallthru
      _
    %453 = vsyncpa [#allocation3], 1
    %454 = vsyncpa [#allocation6], 1
    %455 = vsyncpa [#allocation9], 1
    %456 = vsyncpa [#allocation12], 1
    %457 = vsyncpa [#allocation4], 1

// kernel: tpu_custom_call.1
$region0: #{tpu_custom_call.1}
  #allocation0 [shape = 'u32[]', space=smem, size = 0x4, offset = 0x4, fixed_abs, tag = 'smem constant byte address 0x4 - core index']
  #allocation1 [shape = 'u32[144,128]{1,0:T(1,128)}', space=vmem, size = 0x12000, scoped, tag = 'internal scratch']
  %s0 = inlined_call_operand.hbm [shape: bf16[8,128], index: 0, kind: input, shape index: {}]
  %s1 = inlined_call_operand.hbm [shape: bf16[128,128], index: 1, kind: input, shape index: {}]
  %s2 = inlined_call_operand.hbm [shape: f32[8,128], index: 2, kind: input, shape index: {}]
  %s3 = inlined_call_operand.hbm [shape: bf16[128,128], index: 3, kind: input, shape index: {}]
  %s4 = inlined_call_operand.hbm [shape: f32[8,128], index: 4, kind: input, shape index: {}]
  %s5 = inlined_call_operand.hbm [shape: bf16[128,128], index: 5, kind: input, shape index: {}]
  %s6 = inlined_call_operand.vmem [shape: f32[8,128], index: 6, kind: input, shape index: {}]
  %s7 = inlined_call_operand.hbm [shape: bf16[8,128], index: 7, kind: output, shape index: {}]
  %s8 = sld [smem:[#allocation0]]
  $region62: #{tpu_custom_call.1} parent=0
    _
  %s10 = ssub.s32 1, %s8
  %s11 = scalar_select 0, %s10, %s8
  $region1: #{tpu_custom_call.1} parent=0
    #allocation2 [shape = 'u8[2048]{0}', space=vmem, size = 0x800, scoped, tag = 'input window, operand 0, single buffered']
    #allocation3 [shape = 's32[1]{0}', space=sflag, size = 0x4, scoped, tag = 'scoped memory for tpu_custom_call.1']
    #allocation4 [shape = 's32[1]{0}', space=sflag, size = 0x4, scoped, tag = 'scoped memory for tpu_custom_call.1']
    #allocation5 [shape = 'u8[32768]{0}', space=vmem, size = 0x8000, scoped, tag = 'input window, operand 1, single buffered']
    #allocation6 [shape = 's32[1]{0}', space=sflag, size = 0x4, scoped, tag = 'scoped memory for tpu_custom_call.1']
    #allocation7 [shape = 'u8[4096]{0}', space=vmem, size = 0x1000, scoped, tag = 'input window, operand 2, single buffered']
    #allocation8 [shape = 'u8[32768]{0}', space=vmem, size = 0x8000, scoped, tag = 'input window, operand 3, single buffered']
    #allocation9 [shape = 's32[1]{0}', space=sflag, size = 0x4, scoped, tag = 'scoped memory for tpu_custom_call.1']
    #allocation10 [shape = 'u8[4096]{0}', space=vmem, size = 0x1000, scoped, tag = 'input window, operand 4, single buffered']
    #allocation11 [shape = 'u8[32768]{0}', space=vmem, size = 0x8000, scoped, tag = 'input window, operand 5, single buffered']
    #allocation12 [shape = 's32[1]{0}', space=sflag, size = 0x4, scoped, tag = 'scoped memory for tpu_custom_call.1']
    #allocation13 [shape = 'u8[2048]{0}', space=vmem, size = 0x800, scoped, tag = 'output window, operand 0, single buffered']
    %12 = vsyncpa [#allocation3], 0
    %13 = vsyncpa [#allocation6], 0
    %14 = vsyncpa [#allocation9], 0
    %15 = vsyncpa [#allocation12], 0
    %16 = vsyncpa [#allocation4], 0
    // Predicated region
    $region2: #{tpu_custom_call.1} parent=1 // pred_check
      _
    $region3: #{tpu_custom_call.1} parent=1 // pred_check_branch
      %18 = sbr.rel (0) target = $region5
    $region4: #{tpu_custom_call.1} parent=1 // pred_region
      %s20 = ssub.s32 64, 64
      %21 = vsyncadd [#allocation3], %s20
      %s23 = sshll.u32 [#allocation2], 4
      %s24 = int_to_ptr.vmem [resolvable:$true] %s23
      %26 = dma.hbm_to_vmem [thread:$0]  %s0, 64, %s24, [#allocation3]
    $region5: #{tpu_custom_call.1} parent=1 // pred_fallthru
      _
    // Predicated region
    $region6: #{tpu_custom_call.1} parent=1 // pred_check
      _
    $region7: #{tpu_custom_call.1} parent=1 // pred_check_branch
      %28 = sbr.rel (0) target = $region9
    $region8: #{tpu_custom_call.1} parent=1 // pred_region
      %s30 = ssub.s32 1024, 1024
      %31 = vsyncadd [#allocation6], %s30
      %s32 = sshll.u32 [#allocation5], 4
      %s33 = int_to_ptr.vmem [resolvable:$true] %s32
      %38 = dma.hbm_to_vmem [thread:$0]  %s1, 1024, %s33, [#allocation6], 64, 64, 4
    $region9: #{tpu_custom_call.1} parent=1 // pred_fallthru
      _
    // Predicated region
    $region10: #{tpu_custom_call.1} parent=1 // pred_check
      _
    $region11: #{tpu_custom_call.1} parent=1 // pred_check_branch
      %40 = sbr.rel (0) target = $region13
    $region12: #{tpu_custom_call.1} parent=1 // pred_region
      %s42 = ssub.s32 128, 128
      %43 = vsyncadd [#allocation6], %s42
      %s45 = sshll.u32 [#allocation7], 4
      %s46 = int_to_ptr.vmem [resolvable:$true] %s45
      %48 = dma.hbm_to_vmem [thread:$0]  %s2, 128, %s46, [#allocation6]
    $region13: #{tpu_custom_call.1} parent=1 // pred_fallthru
      _
    // Predicated region
    $region14: #{tpu_custom_call.1} parent=1 // pred_check
      _
    $region15: #{tpu_custom_call.1} parent=1 // pred_check_branch
      %50 = sbr.rel (0) target = $region17
    $region16: #{tpu_custom_call.1} parent=1 // pred_region
      %s52 = ssub.s32 1024, 1024
      %53 = vsyncadd [#allocation9], %s52
      %s54 = sshll.u32 [#allocation8], 4
      %s55 = int_to_ptr.vmem [resolvable:$true] %s54
      %60 = dma.hbm_to_vmem [thread:$0]  %s3, 1024, %s55, [#allocation9], 64, 64, 4
    $region17: #{tpu_custom_call.1} parent=1 // pred_fallthru
      _
    // Predicated region
    $region18: #{tpu_custom_call.1} parent=1 // pred_check
      _
    $region19: #{tpu_custom_call.1} parent=1 // pred_check_branch
      %62 = sbr.rel (0) target = $region21
    $region20: #{tpu_custom_call.1} parent=1 // pred_region
      %s64 = ssub.s32 128, 128
      %65 = vsyncadd [#allocation9], %s64
      %s67 = sshll.u32 [#allocation10], 4
      %s68 = int_to_ptr.vmem [resolvable:$true] %s67
      %70 = dma.hbm_to_vmem [thread:$0]  %s4, 128, %s68, [#allocation9]
    $region21: #{tpu_custom_call.1} parent=1 // pred_fallthru
      _
    // Predicated region
    $region22: #{tpu_custom_call.1} parent=1 // pred_check
      _
    $region23: #{tpu_custom_call.1} parent=1 // pred_check_branch
      %72 = sbr.rel (0) target = $region25
    $region24: #{tpu_custom_call.1} parent=1 // pred_region
      %s74 = ssub.s32 1024, 1024
      %75 = vsyncadd [#allocation12], %s74
      %s76 = sshll.u32 [#allocation11], 4
      %s77 = int_to_ptr.vmem [resolvable:$true] %s76
      %82 = dma.hbm_to_vmem [thread:$0]  %s5, 1024, %s77, [#allocation12], 64, 64, 4
    $region25: #{tpu_custom_call.1} parent=1 // pred_fallthru
      _
    // Predicated region
    $region26: #{tpu_custom_call.1} parent=1 // pred_check
      _
    $region27: #{tpu_custom_call.1} parent=1 // pred_check_branch
      %84 = sbr.rel (0) target = $region29
    $region28: #{tpu_custom_call.1} parent=1 // pred_region
      _
    $region29: #{tpu_custom_call.1} parent=1 // pred_fallthru
      _
    // Predicated region
    $region30: #{tpu_custom_call.1} parent=1 // pred_check
      _
    $region31: #{tpu_custom_call.1} parent=1 // pred_check_branch
      %86 = sbr.rel (0) target = $region33
    $region32: #{tpu_custom_call.1} parent=1 // pred_region
      %87 = dma.done [#allocation3], 64
    $region33: #{tpu_custom_call.1} parent=1 // pred_fallthru
      _
    // Predicated region
    $region34: #{tpu_custom_call.1} parent=1 // pred_check
      _
    $region35: #{tpu_custom_call.1} parent=1 // pred_check_branch
      %89 = sbr.rel (0) target = $region37
    $region36: #{tpu_custom_call.1} parent=1 // pred_region
      %90 = dma.done [#allocation6], 1024
    $region37: #{tpu_custom_call.1} parent=1 // pred_fallthru
      _
    // Predicated region
    $region38: #{tpu_custom_call.1} parent=1 // pred_check
      _
    $region39: #{tpu_custom_call.1} parent=1 // pred_check_branch
      %92 = sbr.rel (0) target = $region41
    $region40: #{tpu_custom_call.1} parent=1 // pred_region
      %93 = dma.done [#allocation6], 128
    $region41: #{tpu_custom_call.1} parent=1 // pred_fallthru
      _
    // Predicated region
    $region42: #{tpu_custom_call.1} parent=1 // pred_check
      _
    $region43: #{tpu_custom_call.1} parent=1 // pred_check_branch
      %95 = sbr.rel (0) target = $region45
    $region44: #{tpu_custom_call.1} parent=1 // pred_region
      %96 = dma.done [#allocation9], 1024
    $region45: #{tpu_custom_call.1} parent=1 // pred_fallthru
      _
    // Predicated region
    $region46: #{tpu_custom_call.1} parent=1 // pred_check
      _
    $region47: #{tpu_custom_call.1} parent=1 // pred_check_branch
      %98 = sbr.rel (0) target = $region49
    $region48: #{tpu_custom_call.1} parent=1 // pred_region
      %99 = dma.done [#allocation9], 128
    $region49: #{tpu_custom_call.1} parent=1 // pred_fallthru
      _
    // Predicated region
    $region50: #{tpu_custom_call.1} parent=1 // pred_check
      _
    $region51: #{tpu_custom_call.1} parent=1 // pred_check_branch
      %101 = sbr.rel (0) target = $region53
    $region52: #{tpu_custom_call.1} parent=1 // pred_region
      %102 = dma.done [#allocation12], 1024
    $region53: #{tpu_custom_call.1} parent=1 // pred_fallthru
      _
    %v104 = vld [vmem:[#allocation2] sm:$0xf]
    %v105 = vld [vmem:[#allocation5] sm:$0xf]
    %v106 = vld [vmem:[#allocation5 + $0x4] sm:$0xf]
    %v107 = vld [vmem:[#allocation5 + $0x8] sm:$0xf]
    %v108 = vld [vmem:[#allocation5 + $0xc] sm:$0xf]
    %v109 = vld [vmem:[#allocation5 + $0x10] sm:$0xf]
    %v110 = vld [vmem:[#allocation5 + $0x14] sm:$0xf]
    %v111 = vld [vmem:[#allocation5 + $0x18] sm:$0xf]
    %v112 = vld [vmem:[#allocation5 + $0x1c] sm:$0xf]
    %v113 = vld [vmem:[#allocation5 + $0x20] sm:$0xf]
    %v114 = vld [vmem:[#allocation5 + $0x24] sm:$0xf]
    %v115 = vld [vmem:[#allocation5 + $0x28] sm:$0xf]
    %v116 = vld [vmem:[#allocation5 + $0x2c] sm:$0xf]
    %v117 = vld [vmem:[#allocation5 + $0x30] sm:$0xf]
    %v118 = vld [vmem:[#allocation5 + $0x34] sm:$0xf]
    %v119 = vld [vmem:[#allocation5 + $0x38] sm:$0xf]
    %v120 = vld [vmem:[#allocation5 + $0x3c] sm:$0xf]
    %v121 = vld [vmem:[#allocation7] sm:$0x1]
    %v122 = vlaneseq
    %v123 = vshrl.u32 %v122, 7
    %v124 = vsub.s32 0, %v123
    %v125 = vrot.slane %v121, %v124
    %v142 = vunpack.c.l.b16 %v105
    %v143 = vunpack.c.l.b16 %v106
    %v144 = vunpack.c.l.b16 %v107
    %v145 = vunpack.c.l.b16 %v108
    %v146 = vunpack.c.l.b16 %v109
    %v147 = vunpack.c.l.b16 %v110
    %v148 = vunpack.c.l.b16 %v111
    %v149 = vunpack.c.l.b16 %v112
    %v150 = vunpack.c.l.b16 %v113
    %v151 = vunpack.c.l.b16 %v114
    %v152 = vunpack.c.l.b16 %v115
    %v153 = vunpack.c.l.b16 %v116
    %v154 = vunpack.c.l.b16 %v117
    %v155 = vunpack.c.l.b16 %v118
    %v156 = vunpack.c.l.b16 %v119
    %v157 = vunpack.c.l.b16 %v120
    %v158 = vpack.c.b16 %v143, %v142
    %v159 = vpack.c.b16 %v145, %v144
    %v160 = vpack.c.b16 %v147, %v146
    %v161 = vpack.c.b16 %v149, %v148
    %v162 = vpack.c.b16 %v151, %v150
    %v163 = vpack.c.b16 %v153, %v152
    %v164 = vpack.c.b16 %v155, %v154
    %v165 = vpack.c.b16 %v157, %v156
    %174 = vmatprep.subr.bf16.mxu0 0
    %175 = vmatpush1.bf16.msra.mxu0 %v165
    %176 = vmatprep.subr.bf16.mxu0 0
    %177 = vmatpush1.bf16.msra.mxu0 %v164
    %178 = vmatprep.subr.bf16.mxu0 0
    %179 = vmatpush1.bf16.msra.mxu0 %v163
    %180 = vmatprep.subr.bf16.mxu0 0
    %181 = vmatpush1.bf16.msra.mxu0 %v162
    %182 = vmatprep.subr.bf16.mxu0 0
    %183 = vmatpush1.bf16.msra.mxu0 %v161
    %184 = vmatprep.subr.bf16.mxu0 0
    %185 = vmatpush1.bf16.msra.mxu0 %v160
    %186 = vmatprep.subr.bf16.mxu0 0
    %187 = vmatpush1.bf16.msra.mxu0 %v159
    %188 = vmatprep.subr.bf16.mxu0 0
    %189 = vmatpush1.bf16.msra.mxu0 %v158
    %190 = vmatprep.subr.bf16.mxu0 0
    %191 = vmatpush2.bf16.msra.mxu0 0
    %192 = vmatprep.subr.bf16.mxu0 0
    %193 = vmatpush2.bf16.msra.mxu0 0
    %194 = vmatprep.subr.bf16.mxu0 0
    %195 = vmatpush2.bf16.msra.mxu0 0
    %196 = vmatprep.subr.bf16.mxu0 0
    %197 = vmatpush2.bf16.msra.mxu0 0
    %198 = vmatprep.subr.bf16.mxu0 0
    %199 = vmatpush2.bf16.msra.mxu0 0
    %200 = vmatprep.subr.bf16.mxu0 0
    %201 = vmatpush2.bf16.msra.mxu0 0
    %202 = vmatprep.subr.bf16.mxu0 0
    %203 = vmatpush2.bf16.msra.mxu0 0
    %204 = vmatprep.subr.bf16.mxu0 0
    %205 = vmatpush2.bf16.msra.mxu0 0
    %206 = vmatprep.mubr.bf16.mxu0 0
    %207 = vmatmul.mubr.bf16.gmra.mxu0 %v104
    %v208 = vpop.f32.mrf.mxu0
    %v209 = vadd.f32 %v125, %v208
    %v210 = vpop.f32.mrf.mxu0
    %v211 = vpop.f32.mrf.mxu0
    %v212 = vpop.f32.mrf.mxu0
    %213 = vdwg.mxu0
    %v214 = vmax.f32 %v209, 0.0
    %v215 = vpack.c.bf16 %v214, %v214
    %v216 = vld [vmem:[#allocation8] sm:$0xf]
    %v217 = vld [vmem:[#allocation8 + $0x4] sm:$0xf]
    %v218 = vld [vmem:[#allocation8 + $0x8] sm:$0xf]
    %v219 = vld [vmem:[#allocation8 + $0xc] sm:$0xf]
    %v220 = vld [vmem:[#allocation8 + $0x10] sm:$0xf]
    %v221 = vld [vmem:[#allocation8 + $0x14] sm:$0xf]
    %v222 = vld [vmem:[#allocation8 + $0x18] sm:$0xf]
    %v223 = vld [vmem:[#allocation8 + $0x1c] sm:$0xf]
    %v224 = vld [vmem:[#allocation8 + $0x20] sm:$0xf]
    %v225 = vld [vmem:[#allocation8 + $0x24] sm:$0xf]
    %v226 = vld [vmem:[#allocation8 + $0x28] sm:$0xf]
    %v227 = vld [vmem:[#allocation8 + $0x2c] sm:$0xf]
    %v228 = vld [vmem:[#allocation8 + $0x30] sm:$0xf]
    %v229 = vld [vmem:[#allocation8 + $0x34] sm:$0xf]
    %v230 = vld [vmem:[#allocation8 + $0x38] sm:$0xf]
    %v231 = vld [vmem:[#allocation8 + $0x3c] sm:$0xf]
    %v232 = vld [vmem:[#allocation10] sm:$0x1]
    %v233 = vlaneseq
    %v234 = vshrl.u32 %v233, 7
    %v235 = vsub.s32 0, %v234
    %v236 = vrot.slane %v232, %v235
    %v253 = vunpack.c.l.b16 %v216
    %v254 = vunpack.c.l.b16 %v217
    %v255 = vunpack.c.l.b16 %v218
    %v256 = vunpack.c.l.b16 %v219
    %v257 = vunpack.c.l.b16 %v220
    %v258 = vunpack.c.l.b16 %v221
    %v259 = vunpack.c.l.b16 %v222
    %v260 = vunpack.c.l.b16 %v223
    %v261 = vunpack.c.l.b16 %v224
    %v262 = vunpack.c.l.b16 %v225
    %v263 = vunpack.c.l.b16 %v226
    %v264 = vunpack.c.l.b16 %v227
    %v265 = vunpack.c.l.b16 %v228
    %v266 = vunpack.c.l.b16 %v229
    %v267 = vunpack.c.l.b16 %v230
    %v268 = vunpack.c.l.b16 %v231
    %v269 = vpack.c.b16 %v254, %v253
    %v270 = vpack.c.b16 %v256, %v255
    %v271 = vpack.c.b16 %v258, %v257
    %v272 = vpack.c.b16 %v260, %v259
    %v273 = vpack.c.b16 %v262, %v261
    %v274 = vpack.c.b16 %v264, %v263
    %v275 = vpack.c.b16 %v266, %v265
    %v276 = vpack.c.b16 %v268, %v267
    %285 = vmatprep.subr.bf16.mxu0 0
    %286 = vmatpush1.bf16.msra.mxu0 %v276
    %287 = vmatprep.subr.bf16.mxu0 0
    %288 = vmatpush1.bf16.msra.mxu0 %v275
    %289 = vmatprep.subr.bf16.mxu0 0
    %290 = vmatpush1.bf16.msra.mxu0 %v274
    %291 = vmatprep.subr.bf16.mxu0 0
    %292 = vmatpush1.bf16.msra.mxu0 %v273
    %293 = vmatprep.subr.bf16.mxu0 0
    %294 = vmatpush1.bf16.msra.mxu0 %v272
    %295 = vmatprep.subr.bf16.mxu0 0
    %296 = vmatpush1.bf16.msra.mxu0 %v271
    %297 = vmatprep.subr.bf16.mxu0 0
    %298 = vmatpush1.bf16.msra.mxu0 %v270
    %299 = vmatprep.subr.bf16.mxu0 0
    %300 = vmatpush1.bf16.msra.mxu0 %v269
    %301 = vmatprep.subr.bf16.mxu0 0
    %302 = vmatpush2.bf16.msra.mxu0 0
    %303 = vmatprep.subr.bf16.mxu0 0
    %304 = vmatpush2.bf16.msra.mxu0 0
    %305 = vmatprep.subr.bf16.mxu0 0
    %306 = vmatpush2.bf16.msra.mxu0 0
    %307 = vmatprep.subr.bf16.mxu0 0
    %308 = vmatpush2.bf16.msra.mxu0 0
    %309 = vmatprep.subr.bf16.mxu0 0
    %310 = vmatpush2.bf16.msra.mxu0 0
    %311 = vmatprep.subr.bf16.mxu0 0
    %312 = vmatpush2.bf16.msra.mxu0 0
    %313 = vmatprep.subr.bf16.mxu0 0
    %314 = vmatpush2.bf16.msra.mxu0 0
    %315 = vmatprep.subr.bf16.mxu0 0
    %316 = vmatpush2.bf16.msra.mxu0 0
    %317 = vmatprep.mubr.bf16.mxu0 0
    %318 = vmatmul.mubr.bf16.gmra.mxu0 %v215
    %v319 = vpop.f32.mrf.mxu0
    %v320 = vadd.f32 %v236, %v319
    %v321 = vpop.f32.mrf.mxu0
    %v322 = vpop.f32.mrf.mxu0
    %v323 = vpop.f32.mrf.mxu0
    %324 = vdwg.mxu0
    %v325 = vmax.f32 %v320, 0.0
    %v326 = vpack.c.bf16 %v325, %v325
    %v327 = vld [vmem:[#allocation11] sm:$0xf]
    %v328 = vld [vmem:[#allocation11 + $0x4] sm:$0xf]
    %v329 = vld [vmem:[#allocation11 + $0x8] sm:$0xf]
    %v330 = vld [vmem:[#allocation11 + $0xc] sm:$0xf]
    %v331 = vld [vmem:[#allocation11 + $0x10] sm:$0xf]
    %v332 = vld [vmem:[#allocation11 + $0x14] sm:$0xf]
    %v333 = vld [vmem:[#allocation11 + $0x18] sm:$0xf]
    %v334 = vld [vmem:[#allocation11 + $0x1c] sm:$0xf]
    %v335 = vld [vmem:[#allocation11 + $0x20] sm:$0xf]
    %v336 = vld [vmem:[#allocation11 + $0x24] sm:$0xf]
    %v337 = vld [vmem:[#allocation11 + $0x28] sm:$0xf]
    %v338 = vld [vmem:[#allocation11 + $0x2c] sm:$0xf]
    %v339 = vld [vmem:[#allocation11 + $0x30] sm:$0xf]
    %v340 = vld [vmem:[#allocation11 + $0x34] sm:$0xf]
    %v341 = vld [vmem:[#allocation11 + $0x38] sm:$0xf]
    %v342 = vld [vmem:[#allocation11 + $0x3c] sm:$0xf]
    %v343 = vld [vmem:[%s6] sm:$0x1]
    %v344 = vlaneseq
    %v345 = vshrl.u32 %v344, 7
    %v346 = vsub.s32 0, %v345
    %v347 = vrot.slane %v343, %v346
    %v364 = vunpack.c.l.b16 %v327
    %v365 = vunpack.c.l.b16 %v328
    %v366 = vunpack.c.l.b16 %v329
    %v367 = vunpack.c.l.b16 %v330
    %v368 = vunpack.c.l.b16 %v331
    %v369 = vunpack.c.l.b16 %v332
    %v370 = vunpack.c.l.b16 %v333
    %v371 = vunpack.c.l.b16 %v334
    %v372 = vunpack.c.l.b16 %v335
    %v373 = vunpack.c.l.b16 %v336
    %v374 = vunpack.c.l.b16 %v337
    %v375 = vunpack.c.l.b16 %v338
    %v376 = vunpack.c.l.b16 %v339
    %v377 = vunpack.c.l.b16 %v340
    %v378 = vunpack.c.l.b16 %v341
    %v379 = vunpack.c.l.b16 %v342
    %v380 = vpack.c.b16 %v365, %v364
    %v381 = vpack.c.b16 %v367, %v366
    %v382 = vpack.c.b16 %v369, %v368
    %v383 = vpack.c.b16 %v371, %v370
    %v384 = vpack.c.b16 %v373, %v372
    %v385 = vpack.c.b16 %v375, %v374
    %v386 = vpack.c.b16 %v377, %v376
    %v387 = vpack.c.b16 %v379, %v378
    %396 = vmatprep.subr.bf16.mxu0 0
    %397 = vmatpush1.bf16.msra.mxu0 %v387
    %398 = vmatprep.subr.bf16.mxu0 0
    %399 = vmatpush1.bf16.msra.mxu0 %v386
    %400 = vmatprep.subr.bf16.mxu0 0
    %401 = vmatpush1.bf16.msra.mxu0 %v385
    %402 = vmatprep.subr.bf16.mxu0 0
    %403 = vmatpush1.bf16.msra.mxu0 %v384
    %404 = vmatprep.subr.bf16.mxu0 0
    %405 = vmatpush1.bf16.msra.mxu0 %v383
    %406 = vmatprep.subr.bf16.mxu0 0
    %407 = vmatpush1.bf16.msra.mxu0 %v382
    %408 = vmatprep.subr.bf16.mxu0 0
    %409 = vmatpush1.bf16.msra.mxu0 %v381
    %410 = vmatprep.subr.bf16.mxu0 0
    %411 = vmatpush1.bf16.msra.mxu0 %v380
    %412 = vmatprep.subr.bf16.mxu0 0
    %413 = vmatpush2.bf16.msra.mxu0 0
    %414 = vmatprep.subr.bf16.mxu0 0
    %415 = vmatpush2.bf16.msra.mxu0 0
    %416 = vmatprep.subr.bf16.mxu0 0
    %417 = vmatpush2.bf16.msra.mxu0 0
    %418 = vmatprep.subr.bf16.mxu0 0
    %419 = vmatpush2.bf16.msra.mxu0 0
    %420 = vmatprep.subr.bf16.mxu0 0
    %421 = vmatpush2.bf16.msra.mxu0 0
    %422 = vmatprep.subr.bf16.mxu0 0
    %423 = vmatpush2.bf16.msra.mxu0 0
    %424 = vmatprep.subr.bf16.mxu0 0
    %425 = vmatpush2.bf16.msra.mxu0 0
    %426 = vmatprep.subr.bf16.mxu0 0
    %427 = vmatpush2.bf16.msra.mxu0 0
    %428 = vmatprep.mubr.bf16.mxu0 0
    %429 = vmatmul.mubr.bf16.gmra.mxu0 %v326
    %v430 = vpop.f32.mrf.mxu0
    %v431 = vadd.f32 %v347, %v430
    %v432 = vpop.f32.mrf.mxu0
    %v433 = vpop.f32.mrf.mxu0
    %v434 = vpop.f32.mrf.mxu0
    %435 = vdwg.mxu0
    %v436 = vtanh.pop %v431
    %v437 = vmul.f32 %v436, 2.0
    %v438 = vpack.c.bf16 %v437, %v437
    %439 = vst [vmem:[#allocation13] sm:$0xf] %v438
    // Predicated region
    $region54: #{tpu_custom_call.1} parent=1 // pred_check
      _
    $region55: #{tpu_custom_call.1} parent=1 // pred_check_branch
      %441 = sbr.rel (0) target = $region57
    $region56: #{tpu_custom_call.1} parent=1 // pred_region
      %s443 = ssub.s32 64, 64
      %444 = vsyncadd [#allocation4], %s443
      %s446 = sshll.u32 [#allocation13], 4
      %s447 = int_to_ptr.vmem [resolvable:$true] %s446
      %449 = dma.vmem_to_hbm [thread:$0]  %s447, 64, %s7, [#allocation4]
    $region57: #{tpu_custom_call.1} parent=1 // pred_fallthru
      _
    // Predicated region
    $region58: #{tpu_custom_call.1} parent=1 // pred_check
      _
    $region59: #{tpu_custom_call.1} parent=1 // pred_check_branch
      %451 = sbr.rel (0) target = $region61
    $region60: #{tpu_custom_call.1} parent=1 // pred_region
      %452 = dma.done [#allocation4], 64
    $region61: #{tpu_custom_call.1} parent=1 // pred_fallthru
      _
    %453 = vsyncpa [#allocation3], 1
    %454 = vsyncpa [#allocation6], 1
    %455 = vsyncpa [#allocation9], 1
    %456 = vsyncpa [#allocation12], 1
    %457 = vsyncpa [#allocation4], 1

</llo_original>
